<compile_context>
chip_gen: v5e
topology: v5e:2x2
jax: 0.10.0
libtpu: 0.0.40
codegen_flags: <defaults>
</compile_context>

<pallas_src>
import jax
import jax.numpy as jnp
from jax.experimental import pallas as pl
from jax.experimental.pallas import tpu as pltpu

_LANE_CANDIDATES = (2048, 1024, 512, 256, 128)   # lane-dense slab widths
_FALLBACK_LANES = 1024
_TARGET_BLOCK_BYTES = 2 * 1024 * 1024            # ~2 MiB per block
_MIN_PALLAS_ELEMS = 8 * 128                      # below this, let XLA fuse


def _h_sigmoid_kernel(x_ref, o_ref):
    x = x_ref[...]
    # ReLU6(x + 3) / 6 == clamp(x + 3, 0, 6) * (1/6)   (pure VPU work)
    o_ref[...] = (jnp.clip(x + 3.0, 0.0, 6.0) * (1.0 / 6.0)).astype(o_ref.dtype)


def _h_sigmoid_jnp(x: jax.Array) -> jax.Array:
    return jnp.clip(x + 3.0, 0.0, 6.0) * (1.0 / 6.0)


def h_sigmoid(x: jax.Array) -> jax.Array:
    """h_sigmoid over any-shaped tensor (elementwise); NCHW in the DeepLab module."""
    # Small activations: skip Pallas so XLA fuses into the producer.
    if x.size < _MIN_PALLAS_ELEMS:
        return _h_sigmoid_jnp(x)

    orig_shape = x.shape
    dtype = x.dtype
    itemsize = jnp.dtype(dtype).itemsize
    total = x.size

    # Pick the widest lane count that divides the total — reshape becomes a
    # free bitcast (no pad, no extra HBM traffic).
    lanes = None
    for cand in _LANE_CANDIDATES:
        if total % cand == 0:
            lanes = cand
            break

    flat = x.reshape(-1)
    if lanes is None:
        # Rare fallback: small tail pad (one extra copy of a small buffer).
        lanes = _FALLBACK_LANES
        tail_pad = (-total) % lanes
        flat = jnp.pad(flat, (0, tail_pad))
    else:
        tail_pad = 0

    rows = flat.shape[0] // lanes
    x2d = flat.reshape(rows, lanes)

    # Dtype-aware sublane multiple: 8 for f32, 16 for bf16, 32 for int8/fp8.
    sublane = max(8, 32 // itemsize)

    # Block rows targeting ~2 MiB per block, rounded to the sublane multiple.
    block_rows = (_TARGET_BLOCK_BYTES // (lanes * itemsize)) // sublane * sublane
    block_rows = max(sublane, min(block_rows, 4096))
    if block_rows >= rows:
        # Full-extent block is always layout-legal, even if rows % sublane != 0.
        block_rows = rows

    grid = (pl.cdiv(rows, block_rows),)  # ragged last block OK for elementwise

    out2d = pl.pallas_call(
        _h_sigmoid_kernel,
        out_shape=jax.ShapeDtypeStruct((rows, lanes), dtype),
        grid_spec=pltpu.PrefetchScalarGridSpec(
            num_scalar_prefetch=0,
            grid=grid,
            in_specs=[pl.BlockSpec((block_rows, lanes), lambda i: (i, 0))],
            out_specs=pl.BlockSpec((block_rows, lanes), lambda i: (i, 0)),
        ),
        compiler_params=pltpu.CompilerParams(
            dimension_semantics=("parallel",),
        ),
    )(x2d)

    out_flat = out2d.reshape(-1)
    if tail_pad:
        out_flat = out_flat[:total]
    return out_flat.reshape(orig_shape)


def h_sigmoid_ref(x: jax.Array) -> jax.Array:
    return jnp.clip(x + 3.0, 0.0, 6.0) / 6.0


if __name__ == "__main__":
    key = jax.random.PRNGKey(0)
    k0, k1, k2 = jax.random.split(key, 3)

    # Primary NCHW case, consistent with the PyTorch module's conv feature maps.
    x = jax.random.normal(k0, (2, 4, 16, 16), dtype=jnp.float32) * 4.0
    out = jax.block_until_ready(h_sigmoid(x))
    ref = h_sigmoid_ref(x)
    assert out.shape == x.shape and out.dtype == x.dtype
    assert jnp.allclose(out, ref, atol=1e-6, rtol=1e-6)

    # Non-lane-aligned spatial size (14x14) — exercises the tail-pad fallback.
    x_odd = jax.random.normal(k1, (2, 8, 14, 14), dtype=jnp.float32) * 4.0
    out_odd = jax.block_until_ready(h_sigmoid(x_odd))
    assert out_odd.shape == x_odd.shape
    assert jnp.allclose(out_odd, h_sigmoid_ref(x_odd), atol=1e-6, rtol=1e-6)

    # bf16 case — exercises dtype-aware block sizing.
    x_bf16 = (jax.random.normal(k2, (2, 4, 16, 16), dtype=jnp.float32) * 4.0).astype(jnp.bfloat16)
    out_bf16 = jax.block_until_ready(h_sigmoid(x_bf16))
    assert out_bf16.dtype == jnp.bfloat16
    assert jnp.allclose(out_bf16.astype(jnp.float32),
                        h_sigmoid_ref(x_bf16).astype(jnp.float32),
                        atol=1e-2, rtol=1e-2)

    print("KERNEL_OK")
</pallas_src>

<mosaic_0001>
module attributes {stable_mosaic.version = 11 : i64} {
  func.func @_h_sigmoid_kernel(%arg0: i32, %arg1: memref<1x2048xf32, #tpu.memory_space<vmem>>, %arg2: memref<1x2048xf32, #tpu.memory_space<vmem>>) attributes {dimension_semantics = [#tpu.dimension_semantics<parallel>], iteration_bounds = array<i64: 1>, scalar_prefetch = 0 : i64, scratch_operands = 0 : i64, tpu.core_type = #tpu.core_type<tc>, window_params = [{transform_indices = @transform_0, window_bounds = array<i64: 1, 2048>}, {transform_indices = @transform_1, window_bounds = array<i64: 1, 2048>}]} {
    %c0 = arith.constant 0 : index
    %c0_0 = arith.constant 0 : index
    %0 = vector.load %arg1[%c0, %c0_0] : memref<1x2048xf32, #tpu.memory_space<vmem>>, vector<1x2048xf32>
    %cst = arith.constant 3.000000e+00 : f32
    %1 = vector.broadcast %cst : f32 to vector<1x2048xf32>
    %2 = arith.addf %0, %1 : vector<1x2048xf32>
    %cst_1 = arith.constant 0.000000e+00 : f32
    %cst_2 = arith.constant 6.000000e+00 : f32
    %3 = vector.broadcast %cst_1 : f32 to vector<1x2048xf32>
    %4 = arith.maximumf %3, %2 : vector<1x2048xf32>
    %5 = vector.broadcast %cst_2 : f32 to vector<1x2048xf32>
    %6 = arith.minimumf %5, %4 : vector<1x2048xf32>
    %cst_3 = arith.constant 0.166666672 : f32
    %7 = vector.broadcast %cst_3 : f32 to vector<1x2048xf32>
    %8 = arith.mulf %6, %7 : vector<1x2048xf32>
    %c0_4 = arith.constant 0 : index
    %c0_5 = arith.constant 0 : index
    %9 = vector.load %arg2[%c0_4, %c0_5] : memref<1x2048xf32, #tpu.memory_space<vmem>>, vector<1x2048xf32>
    tpu.vector_store %arg2[%c0_4, %c0_5], %8 {strides = array<i32>} : memref<1x2048xf32, #tpu.memory_space<vmem>>, vector<1x2048xf32>,
    return
  }
  func.func @transform_0(%arg0: i32) -> (i32, i32) {
    %c0_i32 = arith.constant 0 : i32
    %c0_i32_0 = arith.constant 0 : i32
    return %arg0, %c0_i32 : i32, i32
  }
  func.func @transform_1(%arg0: i32) -> (i32, i32) {
    %c0_i32 = arith.constant 0 : i32
    %c0_i32_0 = arith.constant 0 : i32
    return %arg0, %c0_i32 : i32, i32
  }
}

</mosaic_0001>

<llo_original>
// kernel: tpu_custom_call.1
$region0: #{tpu_custom_call.1}
  #allocation0 [shape = 'u32[]', space=smem, size = 0x4, offset = 0x4, fixed_abs, tag = 'smem constant byte address 0x4 - core index']
  #allocation1 [shape = 'u32[72,128]{1,0:T(1,128)}', space=vmem, size = 0x9000, scoped, tag = 'internal scratch']
  %s0 = inlined_call_operand.hbm [shape: f32[1,2048], index: 0, kind: input, shape index: {}]
  %s1 = inlined_call_operand.hbm [shape: f32[1,2048], index: 1, kind: output, shape index: {}]
  %s2 = sld [smem:[#allocation0]]
  $region18: #{tpu_custom_call.1} parent=0
    _
  %s4 = ssub.s32 1, %s2
  %s5 = scalar_select 0, %s4, %s2
  $region1: #{tpu_custom_call.1} parent=0
    #allocation2 [shape = 'u8[8192]{0}', space=vmem, size = 0x2000, scoped, tag = 'input window, operand 0, single buffered']
    #allocation3 [shape = 's32[1]{0}', space=sflag, size = 0x4, scoped, tag = 'scoped memory for tpu_custom_call.1']
    #allocation4 [shape = 's32[1]{0}', space=sflag, size = 0x4, scoped, tag = 'scoped memory for tpu_custom_call.1']
    #allocation5 [shape = 'u8[8192]{0}', space=vmem, size = 0x2000, scoped, tag = 'output window, operand 0, single buffered']
    %6 = vsyncpa [#allocation3], 0
    %7 = vsyncpa [#allocation4], 0
    // Predicated region
    $region2: #{tpu_custom_call.1} parent=1 // pred_check
      _
    $region3: #{tpu_custom_call.1} parent=1 // pred_check_branch
      %9 = sbr.rel (0) target = $region5
    $region4: #{tpu_custom_call.1} parent=1 // pred_region
      %11 = vsyncadd [#allocation3], 0
      %s13 = sshll.u32 %s0, 4
      %s14 = int_to_ptr.hbm [resolvable:$true] %s13
      %s15 = sshll.u32 [#allocation2], 4
      %s16 = int_to_ptr.vmem [resolvable:$true] %s15
      %18 = dma.hbm_to_vmem [thread:$0]  %s14, 256, %s16, [#allocation3]
    $region5: #{tpu_custom_call.1} parent=1 // pred_fallthru
      _
    // Predicated region
    $region6: #{tpu_custom_call.1} parent=1 // pred_check
      _
    $region7: #{tpu_custom_call.1} parent=1 // pred_check_branch
      %20 = sbr.rel (0) target = $region9
    $region8: #{tpu_custom_call.1} parent=1 // pred_region
      %22 = dma.done [#allocation3], 256
    $region9: #{tpu_custom_call.1} parent=1 // pred_fallthru
      _
    %v23 = vld [vmem:[#allocation2] sm:$0xff]
    %v24 = vld [vmem:[#allocation2 + $0x8] sm:$0xff]
    %v25 = vadd.f32 %v23, 3.0
    %v26 = vadd.f32 %v24, 3.0
    %v27 = vmax.f32 %v25, 0.0
    %v28 = vmax.f32 %v26, 0.0
    %v29 = vmin.f32 %v27, 6.0
    %v30 = vmin.f32 %v28, 6.0
    %v31 = vmul.f32 %v29, 0.16666667
    %v32 = vmul.f32 %v30, 0.16666667
    %33 = vst [vmem:[#allocation5] sm:$0xff] %v31
    %34 = vst [vmem:[#allocation5 + $0x8] sm:$0xff] %v32
    // Predicated region
    $region10: #{tpu_custom_call.1} parent=1 // pred_check
      _
    $region11: #{tpu_custom_call.1} parent=1 // pred_check_branch
      %36 = sbr.rel (0) target = $region13
    $region12: #{tpu_custom_call.1} parent=1 // pred_region
      %38 = vsyncadd [#allocation4], 0
      %s40 = sshll.u32 [#allocation5], 4
      %s41 = int_to_ptr.vmem [resolvable:$true] %s40
      %s42 = sshll.u32 %s1, 4
      %s43 = int_to_ptr.hbm [resolvable:$true] %s42
      %45 = dma.vmem_to_hbm [thread:$0]  %s41, 256, %s43, [#allocation4]
    $region13: #{tpu_custom_call.1} parent=1 // pred_fallthru
      _
    // Predicated region
    $region14: #{tpu_custom_call.1} parent=1 // pred_check
      _
    $region15: #{tpu_custom_call.1} parent=1 // pred_check_branch
      %47 = sbr.rel (0) target = $region17
    $region16: #{tpu_custom_call.1} parent=1 // pred_region
      %49 = dma.done [#allocation4], 256
    $region17: #{tpu_custom_call.1} parent=1 // pred_fallthru
      _
    %50 = vsyncpa [#allocation3], 1
    %51 = vsyncpa [#allocation4], 1

</llo_original>
